<compile_context>
chip_gen: v7x
topology: tpu7x:2x2x1
jax: 0.10.0
libtpu: 0.0.40
codegen_flags: <defaults>
</compile_context>

<pallas_src>
import functools

import jax
import jax.numpy as jnp
from jax.experimental import pallas as pl
from jax.experimental.pallas import tpu as pltpu

EPS = 1e-5
_MAX_LANE_TILE = 8192            # full-row lane tiles up to 8K lanes (32 KiB/row f32)
_TARGET_TILE_BYTES = 8 << 20     # ~8 MiB of x per grid step
_FALLBACK_VMEM_LIMIT = 48 << 20  # safe on every generation if get_tpu_info fails


def _round_up(v, m):
    return ((v + m - 1) // m) * m


def _vmem_limit_bytes():
    """Per-generation VMEM budget: ~70% of physical capacity."""
    try:
        cap = getattr(pltpu.get_tpu_info(), "vmem_capacity_bytes", None)
        if cap:
            return int(cap * 0.7)
    except Exception:
        pass
    return _FALLBACK_VMEM_LIMIT


def _default_tiles(rows, cols, itemsize):
    """Lane-dense tiles: full padded row on the lane axis, ~8 MiB per step."""
    lanes_full = _round_up(cols, 128)
    # Full-row lane tile whenever reasonable; only split the reduction axis for
    # very large spatial sizes (HW > 8192).
    lane_tile = lanes_full if lanes_full <= _MAX_LANE_TILE else _MAX_LANE_TILE
    # dtype-aware row tile (bf16 gets 2x the rows for the same bytes/step).
    sub = 16 if itemsize == 2 else 8
    row_tile = max(sub, _TARGET_TILE_BYTES // (lane_tile * itemsize))
    row_tile = max(sub, (row_tile // sub) * sub)
    if row_tile >= rows:
        row_tile = rows        # block == full dim: always a legal block shape
    return row_tile, lane_tile


# ---------------------------------------------------------------------------
# Pass 1: per-row sum and sum-of-squares over the lane (last) axis.
# ---------------------------------------------------------------------------
def _stats_kernel(x_ref, stats_ref, *, n_cols, lane_tile, need_mask):
    li = pl.program_id(1)
    nl = pl.num_programs(1)

    @pl.when(li == 0)
    def _():
        stats_ref[...] = jnp.zeros_like(stats_ref)

    x = x_ref[...].astype(jnp.float32)

    def accumulate(xv):
        stats_ref[:, 0:1] += jnp.sum(xv, axis=-1, keepdims=True)
        stats_ref[:, 1:2] += jnp.sum(xv * xv, axis=-1, keepdims=True)

    if not need_mask:
        # HW is a multiple of lane_tile: no masking anywhere in the hot path.
        accumulate(x)
    else:
        # Unmasked steady state; mask only the (single) padded last lane block.
        @pl.when(li < nl - 1)
        def _():
            accumulate(x)

        @pl.when(li == nl - 1)
        def _():
            lane_ids = li * lane_tile + jax.lax.broadcasted_iota(
                jnp.int32, x.shape, 1)
            accumulate(jnp.where(lane_ids < n_cols, x, 0.0))


def _row_stats(x2d, row_tile, lane_tile, vmem_limit):
    rows, cols = x2d.shape
    grid = (pl.cdiv(rows, row_tile), pl.cdiv(cols, lane_tile))
    need_mask = (cols % lane_tile) != 0
    kernel = functools.partial(
        _stats_kernel, n_cols=cols, lane_tile=lane_tile, need_mask=need_mask)
    return pl.pallas_call(
        kernel,
        out_shape=jax.ShapeDtypeStruct((rows, 2), jnp.float32),
        grid=grid,
        in_specs=[pl.BlockSpec((row_tile, lane_tile), lambda ri, li: (ri, li))],
        out_specs=pl.BlockSpec((row_tile, 2), lambda ri, li: (ri, 0)),
        compiler_params=pltpu.CompilerParams(
            dimension_semantics=("parallel", "arbitrary"),
            vmem_limit_bytes=vmem_limit,
        ),
        cost_estimate=pl.CostEstimate(
            flops=3 * rows * cols,
            transcendentals=0,
            bytes_accessed=rows * cols * x2d.dtype.itemsize + 8 * rows,
        ),
    )(x2d)


# ---------------------------------------------------------------------------
# Pass 2: per-row affine  out = x * scale + shift  (lane-dense tiled writes).
# ---------------------------------------------------------------------------
def _affine_kernel(x_ref, ss_ref, o_ref):
    x = x_ref[...].astype(jnp.float32)
    scale = ss_ref[:, 0:1]
    shift = ss_ref[:, 1:2]
    o_ref[...] = (x * scale + shift).astype(o_ref.dtype)


def _row_affine(x2d, ss, row_tile, lane_tile, vmem_limit):
    rows, cols = x2d.shape
    grid = (pl.cdiv(rows, row_tile), pl.cdiv(cols, lane_tile))
    return pl.pallas_call(
        _affine_kernel,
        out_shape=jax.ShapeDtypeStruct(x2d.shape, x2d.dtype),
        grid=grid,
        in_specs=[
            pl.BlockSpec((row_tile, lane_tile), lambda ri, li: (ri, li)),
            pl.BlockSpec((row_tile, 2), lambda ri, li: (ri, 0)),
        ],
        out_specs=pl.BlockSpec((row_tile, lane_tile), lambda ri, li: (ri, li)),
        compiler_params=pltpu.CompilerParams(
            dimension_semantics=("parallel", "parallel"),
            vmem_limit_bytes=vmem_limit,
        ),
        cost_estimate=pl.CostEstimate(
            flops=2 * rows * cols,
            transcendentals=0,
            bytes_accessed=2 * rows * cols * x2d.dtype.itemsize + 8 * rows,
        ),
    )(x2d, ss)


# ---------------------------------------------------------------------------
# IBN forward
# ---------------------------------------------------------------------------
def ibn_forward(x, in_gamma, in_beta, bn_gamma, bn_beta, half,
                row_tile=None, lane_tile=None):
    """x: (N, C, H, W) NCHW; params per the IBN module."""
    N, C, H, W = x.shape
    HW = H * W
    rows = N * C

    # Free row-major collapse of contiguous NCHW; no transpose / slice / concat.
    x2d = x.reshape(rows, HW)

    d_row, d_lane = _default_tiles(rows, HW, x.dtype.itemsize)
    if row_tile is None:
        row_tile = d_row
    if lane_tile is None:
        lane_tile = d_lane
    vmem_limit = _vmem_limit_bytes()

    # ---- pass 1: per-(n, c) sum / sumsq over H*W (one HBM read of x) ----
    stats = _row_stats(x2d, row_tile, lane_tile, vmem_limit)
    sums = stats[:, 0].reshape(N, C)
    sqs = stats[:, 1].reshape(N, C)

    # ---- tiny O(N*C) statistics finalization (negligible HBM traffic) ----
    # InstanceNorm branch: per-(n, c) stats over H*W.
    mean_in = sums / HW
    var_in = sqs / HW - mean_in * mean_in

    # BatchNorm branch (training-mode batch statistics): per-channel over N*H*W.
    mean_bn = jnp.sum(sums, axis=0) / (N * HW)
    var_bn = jnp.sum(sqs, axis=0) / (N * HW) - mean_bn * mean_bn

    is_in = (jnp.arange(C) < half)[None, :]
    mean = jnp.where(is_in, mean_in, mean_bn[None, :])
    var = jnp.where(is_in, var_in, jnp.broadcast_to(var_bn[None, :], (N, C)))
    # f32 accumulation keeps E[x^2]-mean^2 accurate; clamp tiny negatives.
    var = jnp.maximum(var, 0.0)

    gamma = jnp.concatenate([in_gamma, bn_gamma]).astype(jnp.float32)[None, :]
    beta = jnp.concatenate([in_beta, bn_beta]).astype(jnp.float32)[None, :]

    inv = jax.lax.rsqrt(var + EPS)
    scale = (inv * gamma).reshape(rows, 1)
    shift = (beta - mean * inv * gamma).reshape(rows, 1)
    ss = jnp.concatenate([scale, shift], axis=1).astype(jnp.float32)

    # TODO(synk): BatchNorm2d running_mean / running_var momentum update (a
    # training-time side effect on module state, not part of the returned
    # tensor) is not reproduced here.

    # ---- pass 2: out = x * scale + shift, both halves into ONE output ----
    out2d = _row_affine(x2d, ss, row_tile, lane_tile, vmem_limit)
    return out2d.reshape(N, C, H, W)


# ---------------------------------------------------------------------------
# Pure-JAX reference mirroring the PyTorch forward.
# ---------------------------------------------------------------------------
def _reference(x, in_gamma, in_beta, bn_gamma, bn_beta, half):
    x1 = x[:, :half].astype(jnp.float32)
    x2 = x[:, half:].astype(jnp.float32)
    m1 = jnp.mean(x1, axis=(2, 3), keepdims=True)
    v1 = jnp.mean((x1 - m1) ** 2, axis=(2, 3), keepdims=True)
    o1 = (x1 - m1) / jnp.sqrt(v1 + EPS)
    o1 = o1 * in_gamma.reshape(1, -1, 1, 1) + in_beta.reshape(1, -1, 1, 1)
    m2 = jnp.mean(x2, axis=(0, 2, 3), keepdims=True)
    v2 = jnp.mean((x2 - m2) ** 2, axis=(0, 2, 3), keepdims=True)
    o2 = (x2 - m2) / jnp.sqrt(v2 + EPS)
    o2 = o2 * bn_gamma.reshape(1, -1, 1, 1) + bn_beta.reshape(1, -1, 1, 1)
    return jnp.concatenate([o1, o2], axis=1).astype(x.dtype)


def _make_params(key, C, half):
    half2 = C - half
    kg1, kb1, kg2, kb2 = jax.random.split(key, 4)
    in_gamma = 1.0 + 0.1 * jax.random.normal(kg1, (half,), dtype=jnp.float32)
    in_beta = 0.1 * jax.random.normal(kb1, (half,), dtype=jnp.float32)
    bn_gamma = 1.0 + 0.1 * jax.random.normal(kg2, (half2,), dtype=jnp.float32)
    bn_beta = 0.1 * jax.random.normal(kb2, (half2,), dtype=jnp.float32)
    return in_gamma, in_beta, bn_gamma, bn_beta


if __name__ == "__main__":
    key = jax.random.PRNGKey(0)
    kx1, kp1, kx2, kp2 = jax.random.split(key, 4)

    # --- case 1: planes=4 -> half=2, H*W a multiple of 128 (no masking) ---
    N, C, H, W = 2, 4, 16, 16
    half = C // 2
    x = jax.random.normal(kx1, (N, C, H, W), dtype=jnp.float32)
    in_g, in_b, bn_g, bn_b = _make_params(kp1, C, half)

    ref = _reference(x, in_g, in_b, bn_g, bn_b, half)

    out = ibn_forward(x, in_g, in_b, bn_g, bn_b, half)
    out = jax.block_until_ready(out)
    assert out.shape == (N, C, H, W)
    assert jnp.allclose(out, ref, atol=1e-4, rtol=1e-4), "mismatch vs reference"

    # Small forced tiles: multi-block lane reduction / accumulation path.
    out_s = ibn_forward(x, in_g, in_b, bn_g, bn_b, half,
                        row_tile=8, lane_tile=128)
    out_s = jax.block_until_ready(out_s)
    assert jnp.allclose(out_s, ref, atol=1e-4, rtol=1e-4), "mismatch (small tiles)"

    # --- case 2: planes=6, H*W=150 (ragged lanes -> padded-tail mask path) ---
    N2, C2, H2, W2 = 2, 6, 10, 15
    half2 = C2 // 2
    x2 = jax.random.normal(kx2, (N2, C2, H2, W2), dtype=jnp.float32)
    in_g2, in_b2, bn_g2, bn_b2 = _make_params(kp2, C2, half2)

    ref2 = _reference(x2, in_g2, in_b2, bn_g2, bn_b2, half2)

    out2 = ibn_forward(x2, in_g2, in_b2, bn_g2, bn_b2, half2)
    out2 = jax.block_until_ready(out2)
    assert jnp.allclose(out2, ref2, atol=1e-4, rtol=1e-4), "mismatch (ragged HW)"

    # Forced small tiles on the ragged shape: last lane block masked via pl.when,
    # partial row blocks clipped on writeback.
    out2_s = ibn_forward(x2, in_g2, in_b2, bn_g2, bn_b2, half2,
                         row_tile=8, lane_tile=128)
    out2_s = jax.block_until_ready(out2_s)
    assert jnp.allclose(out2_s, ref2, atol=1e-4, rtol=1e-4), \
        "mismatch (ragged HW, small tiles)"

    print("KERNEL_OK")
</pallas_src>

<mosaic_0001>
module attributes {stable_mosaic.version = 11 : i64} {
  func.func @_stats_kernel(%arg0: i32, %arg1: i32, %arg2: memref<8x256xf32, #tpu.memory_space<vmem>>, %arg3: memref<8x2xf32, #tpu.memory_space<vmem>>) attributes {dimension_semantics = [#tpu.dimension_semantics<parallel>, #tpu.dimension_semantics<arbitrary>], iteration_bounds = array<i64: 1, 1>, scalar_prefetch = 0 : i64, scratch_operands = 0 : i64, tpu.core_type = #tpu.core_type<tc>, window_params = [{transform_indices = @transform_0, window_bounds = array<i64: 8, 256>}, {transform_indices = @transform_1, window_bounds = array<i64: 8, 2>}]} {
    %c0_i32 = arith.constant 0 : i32
    %0 = arith.cmpi eq, %arg1, %c0_i32 : i32
    %1 = arith.extui %0 : i1 to i32
    %c0_i32_0 = arith.constant 0 : i32
    %2 = arith.cmpi ne, %1, %c0_i32_0 : i32
    scf.if %2 {
      %cst_10 = arith.constant 0.000000e+00 : f32
      %15 = vector.broadcast %cst_10 : f32 to vector<8x2xf32>
      %c0_11 = arith.constant 0 : index
      %c0_12 = arith.constant 0 : index
      %16 = vector.load %arg3[%c0_11, %c0_12] : memref<8x2xf32, #tpu.memory_space<vmem>>, vector<8x2xf32>
      tpu.vector_store %arg3[%c0_11, %c0_12], %15 {strides = array<i32>} : memref<8x2xf32, #tpu.memory_space<vmem>>, vector<8x2xf32>,
    } else {
    }
    %c0 = arith.constant 0 : index
    %c0_1 = arith.constant 0 : index
    %3 = vector.load %arg2[%c0, %c0_1] : memref<8x256xf32, #tpu.memory_space<vmem>>, vector<8x256xf32>
    %c0_2 = arith.constant 0 : index
    %c0_3 = arith.constant 0 : index
    %4 = vector.load %arg3[%c0_2, %c0_3] : memref<8x2xf32, #tpu.memory_space<vmem>>, vector<8x1xf32>
    %cst = arith.constant dense<0.000000e+00> : vector<8xf32>
    %5 = vector.multi_reduction <add>, %3, %cst [1] : vector<8x256xf32> to vector<8xf32>
    %6 = vector.shape_cast %5 : vector<8xf32> to vector<8x1xf32>
    %7 = arith.addf %4, %6 : vector<8x1xf32>
    %c0_4 = arith.constant 0 : index
    %c0_5 = arith.constant 0 : index
    %8 = vector.load %arg3[%c0_4, %c0_5] : memref<8x2xf32, #tpu.memory_space<vmem>>, vector<8x1xf32>
    tpu.vector_store %arg3[%c0_4, %c0_5], %7 {strides = array<i32>} : memref<8x2xf32, #tpu.memory_space<vmem>>, vector<8x1xf32>,
    %c0_6 = arith.constant 0 : index
    %c1 = arith.constant 1 : index
    %9 = vector.load %arg3[%c0_6, %c1] : memref<8x2xf32, #tpu.memory_space<vmem>>, vector<8x1xf32>
    %10 = arith.mulf %3, %3 : vector<8x256xf32>
    %cst_7 = arith.constant dense<0.000000e+00> : vector<8xf32>
    %11 = vector.multi_reduction <add>, %10, %cst_7 [1] : vector<8x256xf32> to vector<8xf32>
    %12 = vector.shape_cast %11 : vector<8xf32> to vector<8x1xf32>
    %13 = arith.addf %9, %12 : vector<8x1xf32>
    %c0_8 = arith.constant 0 : index
    %c1_9 = arith.constant 1 : index
    %14 = vector.load %arg3[%c0_8, %c1_9] : memref<8x2xf32, #tpu.memory_space<vmem>>, vector<8x1xf32>
    tpu.vector_store %arg3[%c0_8, %c1_9], %13 {strides = array<i32>} : memref<8x2xf32, #tpu.memory_space<vmem>>, vector<8x1xf32>,
    return
  }
  func.func @transform_0(%arg0: i32, %arg1: i32) -> (i32, i32) {
    %c0_i32 = arith.constant 0 : i32
    return %arg0, %arg1 : i32, i32
  }
  func.func @transform_1(%arg0: i32, %arg1: i32) -> (i32, i32) {
    %c0_i32 = arith.constant 0 : i32
    %c0_i32_0 = arith.constant 0 : i32
    return %arg0, %c0_i32 : i32, i32
  }
}

</mosaic_0001>

<llo_original>
// kernel: tpu_custom_call.1
$region0: #{tpu_custom_call.1}
  #allocation0 [shape = 'u32[]', space=smem, size = 0x4, offset = 0x4, fixed_abs, tag = 'smem constant byte address 0x4 - core index']
  #allocation1 [shape = 'u32[144,128]{1,0:T(1,128)}', space=vmem, size = 0x12000, scoped, tag = 'internal scratch']
  %s0 = inlined_call_operand.hbm [shape: f32[8,256], index: 0, kind: input, shape index: {}]
  %s1 = inlined_call_operand.vmem [shape: f32[8,2], index: 1, kind: output, shape index: {}]
  %s2 = sld [smem:[#allocation0]]
  $region22: #{tpu_custom_call.1} parent=0
    _
  %s4 = ssub.s32 1, %s2
  %s5 = scalar_select 0, %s4, %s2
  $region1: #{tpu_custom_call.1} parent=0
    #allocation2 [shape = 'u8[8192]{0}', space=vmem, size = 0x2000, scoped, tag = 'input window, operand 0, single buffered']
    #allocation3 [shape = 's32[1]{0}', space=sflag, size = 0x4, scoped, tag = 'scoped memory for tpu_custom_call.1']
    %6 = vsyncpa [#allocation3], 0
    // Predicated region
    $region2: #{tpu_custom_call.1} parent=1 // pred_check
      _
    $region3: #{tpu_custom_call.1} parent=1 // pred_check_branch
      %8 = sbr.rel (0) target = $region5
    $region4: #{tpu_custom_call.1} parent=1 // pred_region
      %s10 = ssub.s32 256, 256
      %11 = vsyncadd [#allocation3], %s10
      %s13 = sshll.u32 [#allocation2], 4
      %s14 = int_to_ptr.vmem [resolvable:$true] %s13
      %16 = dma.hbm_to_vmem [thread:$0]  %s0, 256, %s14, [#allocation3]
    $region5: #{tpu_custom_call.1} parent=1 // pred_fallthru
      _
    // Predicated region
    $region6: #{tpu_custom_call.1} parent=1 // pred_check
      _
    $region7: #{tpu_custom_call.1} parent=1 // pred_check_branch
      %18 = sbr.rel (0) target = $region9
    $region8: #{tpu_custom_call.1} parent=1 // pred_region
      %19 = dma.done [#allocation3], 256
    $region9: #{tpu_custom_call.1} parent=1 // pred_fallthru
      _
    %p20 = scmp.eq.s32.totalorder 0, 0
    // Predicated region
    $region10: #{tpu_custom_call.1} parent=1 // pred_check
      %p21 = pneg %p20
    $region11: #{tpu_custom_call.1} parent=1 // pred_check_branch
      %23 = sbr.rel (%p21) target = $region13
    $region12: #{tpu_custom_call.1} parent=1 // pred_region
      %vm24 = vcmask 15360
      %25 = vst.msk [vmem:[%s1] sm:$0xff] %vm24, 0.0
    $region13: #{tpu_custom_call.1} parent=1 // pred_fallthru
      _
    %v26 = vld [vmem:[#allocation2] sm:$0xff]
    %v27 = vld [vmem:[#allocation2 + $0x8] sm:$0xff]
    %v28 = vld [vmem:[%s1] sm:$0xff]
    %v29 = vadd.f32 %v26, %v27
    %30 = vadd.xlane.f32.xlu0 %v29
    %v31 = vpop.xlane.xlu0 %30
    %v32 = vadd.f32 %v28, %v31
    %vm33 = vcmask 7168
    %34 = vst.msk [vmem:[%s1] sm:$0xff] %vm33, %v32
    %v35 = vld [vmem:[%s1] sm:$0xff]
    %v36 = vmul.f32 %v26, %v26
    %v37 = vmul.f32 %v27, %v27
    %v38 = vadd.f32 %v36, %v37
    %39 = vadd.xlane.f32.xlu0 %v38
    %v40 = vpop.xlane.xlu0 %39
    %v41 = vadd.f32 %v35, %v40
    %vm42 = vcmask 15368
    %43 = vst.msk [vmem:[%s1] sm:$0xff] %vm42, %v41
    // Predicated region
    $region14: #{tpu_custom_call.1} parent=1 // pred_check
      _
    $region15: #{tpu_custom_call.1} parent=1 // pred_check_branch
      %45 = sbr.rel (0) target = $region17
    $region16: #{tpu_custom_call.1} parent=1 // pred_region
      _
    $region17: #{tpu_custom_call.1} parent=1 // pred_fallthru
      _
    // Predicated region
    $region18: #{tpu_custom_call.1} parent=1 // pred_check
      _
    $region19: #{tpu_custom_call.1} parent=1 // pred_check_branch
      %47 = sbr.rel (0) target = $region21
    $region20: #{tpu_custom_call.1} parent=1 // pred_region
      _
    $region21: #{tpu_custom_call.1} parent=1 // pred_fallthru
      _
    %48 = vsyncpa [#allocation3], 1

</llo_original>
